<compile_context>
chip_gen: v7x
topology: tpu7x:2x2x1
jax: 0.10.0
libtpu: 0.0.40
codegen_flags: <defaults>
</compile_context>

<pallas_src>
import functools

import jax
import jax.numpy as jnp
from jax.experimental import pallas as pl
from jax.experimental.pallas import tpu as pltpu


def _make_loss_stats_kernel(num_classes, fold, pixel_values, hw_g, tile,
                            needs_mask):
    """Per-tile statistics kernel, closed over static config.

    Folded layout: logits block (1, C*k, tile), row c*k+g = class c of pixel
    group g (group g covers pixels [g*hw_g, (g+1)*hw_g)); target block
    (1, k, tile) of raw pixel values.
    """
    C = num_classes
    k = fold
    rows = C * k
    c_pow2 = C > 1 and (C & (C - 1)) == 0

    def class_reduce_bcast(v, combine):
        """Reduce over the class axis (stride-k rows) of a (C*k, T) array.

        Result is broadcast over classes: every row holds its pixel-group's
        reduction.  Power-of-two C uses log2(C) sublane rolls (XLU slot) on
        packed full-width vregs; otherwise a slice/concat fallback is used.
        """
        if C == 1:
            return v
        if c_pow2:
            r = v
            span = k
            while span < rows:
                r = combine(r, pltpu.roll(r, shift=span, axis=0))
                span *= 2
            return r
        red = v[0:k, :]
        for ci in range(1, C):
            red = combine(red, v[ci * k:(ci + 1) * k, :])
        return jnp.concatenate([red] * C, axis=0)

    def kernel(logits_ref, y_ref,
               ce_ref, inter_ref, psum_ref, tsum_ref,
               acc_pt, acc_p, acc_t, acc_ce):
        j = pl.program_id(1)
        last = pl.num_programs(1) - 1

        # Re-initialize VMEM accumulators at the start of each sample's strip
        # (scratch persists across the whole grid; j is the sequential axis).
        @pl.when(j == 0)
        def _():
            acc_pt[...] = jnp.zeros_like(acc_pt)
            acc_p[...] = jnp.zeros_like(acc_p)
            acc_t[...] = jnp.zeros_like(acc_t)
            acc_ce[...] = jnp.zeros_like(acc_ce)

        x = logits_ref[0].astype(jnp.float32)    # (C*k, T)  packed 8 sublanes
        yv = y_ref[0]                             # (k, T)    raw pixel values

        # One-hot target built directly from per-class pixel-value compares
        # on the small (k, T) map; unknown pixel values fall back to class 0.
        if C > 1:
            matches = [(yv == pixel_values[ci]) for ci in range(1, C)]
            other = matches[0]
            for mch in matches[1:]:
                other = jnp.logical_or(other, mch)
            pieces = [jnp.logical_not(other).astype(jnp.float32)]
            pieces += [mch.astype(jnp.float32) for mch in matches]
            t = jnp.concatenate(pieces, axis=0)   # (C*k, T), row = c*k + g
        else:
            t = jnp.ones((rows, tile), jnp.float32)

        # Numerically stable softmax over the class axis (intra-vreg rolls).
        mb = class_reduce_bcast(x, jnp.maximum)   # per-group max, broadcast
        e = jnp.exp(x - mb)
        sb = class_reduce_bcast(e, jnp.add)       # per-group sum, broadcast
        p = e / sb                                # exact division (parity)

        # Cross-entropy per pixel in logsumexp form: (m + log s) - logit[tgt].
        tgtb = class_reduce_bcast(t * x, jnp.add)
        ce = (mb[0:k, :] + jnp.log(sb[0:k, :])) - tgtb[0:k, :]    # (k, T)

        def accumulate(p_, t_, ce_):
            acc_pt[...] += p_ * t_
            acc_p[...] += p_
            acc_t[...] += t_
            acc_ce[...] += ce_

        if needs_mask:
            # Only the last tile has padded lanes: keep the common tiles on
            # the unmasked (cheap) path.
            @pl.when(j != last)
            def _():
                accumulate(p, t, ce)

            @pl.when(j == last)
            def _():
                col = j * tile + jax.lax.broadcasted_iota(
                    jnp.int32, (1, tile), 1)
                valid = col < hw_g
                accumulate(jnp.where(valid, p, 0.0),
                           jnp.where(valid, t, 0.0),
                           jnp.where(valid, ce, 0.0))
        else:
            accumulate(p, t, ce)

        # Finalize once per sample: cross-lane reduce + tiny output store.
        @pl.when(j == last)
        def _():
            inter_ref[...] = jnp.sum(acc_pt[...], axis=1,
                                     keepdims=True).reshape(1, rows, 1)
            psum_ref[...] = jnp.sum(acc_p[...], axis=1,
                                    keepdims=True).reshape(1, rows, 1)
            tsum_ref[...] = jnp.sum(acc_t[...], axis=1,
                                    keepdims=True).reshape(1, rows, 1)
            ce_ref[...] = jnp.sum(acc_ce[...]).reshape(1, 1, 1)

    return kernel


def _loss_stats(logits_3d, y_3d, pixel_values, num_classes, fold,
                *, max_tile=32768):
    """logits_3d: (N, C*k, HW/k) float; y_3d: (N, k, HW/k) int32 pixel values.

    Returns per-sample partial sums:
      ce_sum (N,1,1), intersection / prob_sum / target_sum (N, C*k, 1)
    (the k pixel-groups per class are folded back in the JAX epilogue).
    """
    n, rows, hw_g = logits_3d.shape
    assert rows == num_classes * fold

    hw_pad = ((hw_g + 127) // 128) * 128      # lane multiple
    tile = min(max_tile, hw_pad)
    grid_j = pl.cdiv(hw_g, tile)
    needs_mask = (hw_g % tile) != 0

    kernel = _make_loss_stats_kernel(
        num_classes, fold, tuple(int(v) for v in pixel_values),
        hw_g, tile, needs_mask)

    out_shapes = (
        jax.ShapeDtypeStruct((n, 1, 1), jnp.float32),     # per-sample CE sum
        jax.ShapeDtypeStruct((n, rows, 1), jnp.float32),  # sum(p*t) per row
        jax.ShapeDtypeStruct((n, rows, 1), jnp.float32),  # sum(p)   per row
        jax.ShapeDtypeStruct((n, rows, 1), jnp.float32),  # sum(t)   per row
    )

    k = fold
    return pl.pallas_call(
        kernel,
        out_shape=out_shapes,
        grid_spec=pltpu.PrefetchScalarGridSpec(
            num_scalar_prefetch=0,
            grid=(n, grid_j),
            in_specs=[
                pl.BlockSpec((1, rows, tile), lambda i, j: (i, 0, j)),  # logits
                pl.BlockSpec((1, k, tile), lambda i, j: (i, 0, j)),     # targets
            ],
            out_specs=[
                pl.BlockSpec((1, 1, 1), lambda i, j: (i, 0, 0)),
                pl.BlockSpec((1, rows, 1), lambda i, j: (i, 0, 0)),
                pl.BlockSpec((1, rows, 1), lambda i, j: (i, 0, 0)),
                pl.BlockSpec((1, rows, 1), lambda i, j: (i, 0, 0)),
            ],
            scratch_shapes=[
                pltpu.VMEM((rows, tile), jnp.float32),   # acc sum(p*t)
                pltpu.VMEM((rows, tile), jnp.float32),   # acc sum(p)
                pltpu.VMEM((rows, tile), jnp.float32),   # acc sum(t)
                pltpu.VMEM((k, tile), jnp.float32),      # acc CE
            ],
        ),
        compiler_params=pltpu.CompilerParams(
            dimension_semantics=("parallel", "arbitrary"),
            vmem_limit_bytes=32 * 1024 * 1024,
        ),
    )(logits_3d, y_3d)


class CombinedLossPallas:
    """JAX/Pallas port of CombinedLoss(loss_list=['cross_entropy','dice'],
    weights=[0.5, 0.5], class_weights=None)."""

    def __init__(self, labels, labels_to_pixels, weights=(0.5, 0.5),
                 smooth=1e-6):
        self.labels = list(labels)
        self.pixel_values = tuple(int(labels_to_pixels[l]) for l in labels)
        self.weights = tuple(float(w) for w in weights)
        self.smooth = float(smooth)
        # TODO(synk): class_weights (weighted NLL) omitted; the reference
        # instance here uses class_weights=None (uniform).

    @functools.partial(jax.jit, static_argnums=0)
    def __call__(self, x, y):
        # x: (N, C, H, W) float logits (f32 or bf16);  y: (N, H, W) pixel map.
        n, c, h, w = x.shape
        assert c == len(self.labels)
        hw = h * w

        # Sublane fold: pack k pixel-groups into otherwise-unused sublanes.
        # Pure reshape (HW is the contiguous minor axis) -> no transpose,
        # no upcast, no extra HBM traffic.
        k = max(1, 8 // c) if c <= 8 else 1
        while k > 1 and hw % k != 0:
            k -= 1
        hw_g = hw // k

        logits_3d = x.reshape(n, c * k, hw_g)
        y_3d = y.reshape(n, k, hw_g).astype(jnp.int32)

        ce_sum, inter, psum, tsum = _loss_stats(logits_3d, y_3d,
                                                self.pixel_values, c, k)

        # Cross-entropy: mean over all pixels (class_weights=None).
        ce_loss = jnp.sum(ce_sum) / (n * hw)

        # Dice from whole-batch per-class sums (fold the k groups back).
        inter_c = inter.reshape(n, c, k).sum(axis=(0, 2))
        psum_c = psum.reshape(n, c, k).sum(axis=(0, 2))
        tsum_c = tsum.reshape(n, c, k).sum(axis=(0, 2))
        dice_score = (2.0 * inter_c + self.smooth) / (psum_c + tsum_c +
                                                      self.smooth)
        dice_loss = 1.0 - jnp.mean(dice_score)

        return self.weights[0] * ce_loss + self.weights[1] * dice_loss


def _reference_loss(x, y, pixel_values, weights, smooth):
    """Pure-JAX reference (same semantics as the PyTorch module)."""
    n, c, h, w = x.shape
    logits = x.reshape(n, c, h * w).astype(jnp.float32)
    yv = y.reshape(n, h * w)
    y_idx = jnp.zeros_like(yv, dtype=jnp.int32)
    for ci in range(1, c):
        y_idx = jnp.where(yv == pixel_values[ci], ci, y_idx)
    t = jax.nn.one_hot(y_idx, c, dtype=jnp.float32, axis=1)       # (n, c, hw)
    logp = jax.nn.log_softmax(logits, axis=1)
    ce_loss = jnp.mean(-jnp.sum(t * logp, axis=1))
    p = jax.nn.softmax(logits, axis=1)
    inter = jnp.sum(p * t, axis=(0, 2))
    psum = jnp.sum(p, axis=(0, 2))
    tsum = jnp.sum(t, axis=(0, 2))
    dice = (2.0 * inter + smooth) / (psum + tsum + smooth)
    dice_loss = 1.0 - jnp.mean(dice)
    return weights[0] * ce_loss + weights[1] * dice_loss


if __name__ == "__main__":
    # Small shapes: batch=2, classes=4, spatial=16x16 -> 256 pixels per sample.
    N, C, H, W = 2, 4, 16, 16
    labels = ["background", "class_a", "class_b", "class_c"]
    labels_to_pixels = {"background": 0, "class_a": 85,
                        "class_b": 170, "class_c": 255}

    key = jax.random.PRNGKey(0)
    kx, ky = jax.random.split(key)
    x = jax.random.normal(kx, (N, C, H, W), dtype=jnp.float32)
    pix_vals = jnp.asarray([labels_to_pixels[l] for l in labels], jnp.int32)
    y = pix_vals[jax.random.randint(ky, (N, H, W), 0, C)]

    loss_fn = CombinedLossPallas(labels, labels_to_pixels, weights=(0.5, 0.5))
    loss = loss_fn(x, y)
    jax.block_until_ready(loss)

    ref = _reference_loss(x, y, loss_fn.pixel_values, loss_fn.weights,
                          loss_fn.smooth)
    assert loss.shape == () and bool(jnp.isfinite(loss))
    assert bool(jnp.allclose(loss, ref, rtol=1e-3, atol=1e-3)), (loss, ref)
    print("KERNEL_OK")
</pallas_src>

<mosaic_0001>
module attributes {stable_mosaic.version = 11 : i64} {
  func.func @kernel(%arg0: i32, %arg1: i32, %arg2: memref<1x8x128xf32, #tpu.memory_space<vmem>>, %arg3: memref<1x2x128xi32, #tpu.memory_space<vmem>>, %arg4: memref<1x1x1xf32, #tpu.memory_space<vmem>>, %arg5: memref<1x8x1xf32, #tpu.memory_space<vmem>>, %arg6: memref<1x8x1xf32, #tpu.memory_space<vmem>>, %arg7: memref<1x8x1xf32, #tpu.memory_space<vmem>>, %arg8: memref<8x128xf32, #tpu.memory_space<vmem>>, %arg9: memref<8x128xf32, #tpu.memory_space<vmem>>, %arg10: memref<8x128xf32, #tpu.memory_space<vmem>>, %arg11: memref<2x128xf32, #tpu.memory_space<vmem>>) attributes {dimension_semantics = [#tpu.dimension_semantics<parallel>, #tpu.dimension_semantics<arbitrary>], iteration_bounds = array<i64: 2, 1>, scalar_prefetch = 0 : i64, scratch_operands = 4 : i64, tpu.core_type = #tpu.core_type<tc>, window_params = [{transform_indices = @transform_0, window_bounds = array<i64: 1, 8, 128>}, {transform_indices = @transform_1, window_bounds = array<i64: 1, 2, 128>}, {transform_indices = @transform_2, window_bounds = array<i64: 1, 1, 1>}, {transform_indices = @transform_3, window_bounds = array<i64: 1, 8, 1>}, {transform_indices = @transform_4, window_bounds = array<i64: 1, 8, 1>}, {transform_indices = @transform_5, window_bounds = array<i64: 1, 8, 1>}]} {
    %c0_i32 = arith.constant 0 : i32
    %0 = arith.cmpi eq, %arg1, %c0_i32 : i32
    %1 = arith.extui %0 : i1 to i32
    %c0_i32_0 = arith.constant 0 : i32
    %2 = arith.cmpi ne, %1, %c0_i32_0 : i32
    scf.if %2 {
      %cst_28 = arith.constant 0.000000e+00 : f32
      %63 = vector.broadcast %cst_28 : f32 to vector<8x128xf32>
      %c0_29 = arith.constant 0 : index
      %c0_30 = arith.constant 0 : index
      %64 = vector.load %arg8[%c0_29, %c0_30] : memref<8x128xf32, #tpu.memory_space<vmem>>, vector<8x128xf32>
      tpu.vector_store %arg8[%c0_29, %c0_30], %63 {strides = array<i32>} : memref<8x128xf32, #tpu.memory_space<vmem>>, vector<8x128xf32>,
      %cst_31 = arith.constant 0.000000e+00 : f32
      %65 = vector.broadcast %cst_31 : f32 to vector<8x128xf32>
      %c0_32 = arith.constant 0 : index
      %c0_33 = arith.constant 0 : index
      %66 = vector.load %arg9[%c0_32, %c0_33] : memref<8x128xf32, #tpu.memory_space<vmem>>, vector<8x128xf32>
      tpu.vector_store %arg9[%c0_32, %c0_33], %65 {strides = array<i32>} : memref<8x128xf32, #tpu.memory_space<vmem>>, vector<8x128xf32>,
      %cst_34 = arith.constant 0.000000e+00 : f32
      %67 = vector.broadcast %cst_34 : f32 to vector<8x128xf32>
      %c0_35 = arith.constant 0 : index
      %c0_36 = arith.constant 0 : index
      %68 = vector.load %arg10[%c0_35, %c0_36] : memref<8x128xf32, #tpu.memory_space<vmem>>, vector<8x128xf32>
      tpu.vector_store %arg10[%c0_35, %c0_36], %67 {strides = array<i32>} : memref<8x128xf32, #tpu.memory_space<vmem>>, vector<8x128xf32>,
      %cst_37 = arith.constant 0.000000e+00 : f32
      %69 = vector.broadcast %cst_37 : f32 to vector<2x128xf32>
      %c0_38 = arith.constant 0 : index
      %c0_39 = arith.constant 0 : index
      %70 = vector.load %arg11[%c0_38, %c0_39] : memref<2x128xf32, #tpu.memory_space<vmem>>, vector<2x128xf32>
      tpu.vector_store %arg11[%c0_38, %c0_39], %69 {strides = array<i32>} : memref<2x128xf32, #tpu.memory_space<vmem>>, vector<2x128xf32>,
    } else {
    }
    %c0 = arith.constant 0 : index
    %c0_1 = arith.constant 0 : index
    %c0_2 = arith.constant 0 : index
    %3 = vector.load %arg2[%c0, %c0_1, %c0_2] : memref<1x8x128xf32, #tpu.memory_space<vmem>>, vector<1x8x128xf32>
    %4 = vector.shape_cast %3 : vector<1x8x128xf32> to vector<8x128xf32>
    %c0_3 = arith.constant 0 : index
    %c0_4 = arith.constant 0 : index
    %c0_5 = arith.constant 0 : index
    %5 = vector.load %arg3[%c0_3, %c0_4, %c0_5] : memref<1x2x128xi32, #tpu.memory_space<vmem>>, vector<1x2x128xi32>
    %6 = vector.shape_cast %5 : vector<1x2x128xi32> to vector<2x128xi32>
    %c85_i32 = arith.constant 85 : i32
    %7 = vector.broadcast %c85_i32 : i32 to vector<2x128xi32>
    %8 = arith.cmpi eq, %6, %7 : vector<2x128xi32>
    %c170_i32 = arith.constant 170 : i32
    %9 = vector.broadcast %c170_i32 : i32 to vector<2x128xi32>
    %10 = arith.cmpi eq, %6, %9 : vector<2x128xi32>
    %c255_i32 = arith.constant 255 : i32
    %11 = vector.broadcast %c255_i32 : i32 to vector<2x128xi32>
    %12 = arith.cmpi eq, %6, %11 : vector<2x128xi32>
    %13 = arith.ori %8, %10 : vector<2x128xi1>
    %14 = arith.ori %13, %12 : vector<2x128xi1>
    %cst = arith.constant dense<true> : vector<2x128xi1>
    %15 = arith.xori %14, %cst : vector<2x128xi1>
    %16 = arith.extui %15 : vector<2x128xi1> to vector<2x128xi32>
    %17 = arith.sitofp %16 : vector<2x128xi32> to vector<2x128xf32>
    %18 = arith.extui %8 : vector<2x128xi1> to vector<2x128xi32>
    %19 = arith.sitofp %18 : vector<2x128xi32> to vector<2x128xf32>
    %20 = arith.extui %10 : vector<2x128xi1> to vector<2x128xi32>
    %21 = arith.sitofp %20 : vector<2x128xi32> to vector<2x128xf32>
    %22 = arith.extui %12 : vector<2x128xi1> to vector<2x128xi32>
    %23 = arith.sitofp %22 : vector<2x128xi32> to vector<2x128xf32>
    %24 = tpu.concatenate %17, %19, %21, %23 in 0 : vector<2x128xf32>, vector<2x128xf32>, vector<2x128xf32>, vector<2x128xf32> -> vector<8x128xf32>
    %c2_i32 = arith.constant 2 : i32
    %25 = tpu.dynamic_rotate %4 by %c2_i32 dim 0 : vector<8x128xf32>, i32 -> vector<8x128xf32>
    %26 = arith.maximumf %4, %25 : vector<8x128xf32>
    %c4_i32 = arith.constant 4 : i32
    %27 = tpu.dynamic_rotate %26 by %c4_i32 dim 0 : vector<8x128xf32>, i32 -> vector<8x128xf32>
    %28 = arith.maximumf %26, %27 : vector<8x128xf32>
    %29 = arith.subf %4, %28 : vector<8x128xf32>
    %30 = math.exp %29 : vector<8x128xf32>
    %c2_i32_6 = arith.constant 2 : i32
    %31 = tpu.dynamic_rotate %30 by %c2_i32_6 dim 0 : vector<8x128xf32>, i32 -> vector<8x128xf32>
    %32 = arith.addf %30, %31 : vector<8x128xf32>
    %c4_i32_7 = arith.constant 4 : i32
    %33 = tpu.dynamic_rotate %32 by %c4_i32_7 dim 0 : vector<8x128xf32>, i32 -> vector<8x128xf32>
    %34 = arith.addf %32, %33 : vector<8x128xf32>
    %35 = arith.divf %30, %34 : vector<8x128xf32>
    %36 = arith.mulf %24, %4 : vector<8x128xf32>
    %c2_i32_8 = arith.constant 2 : i32
    %37 = tpu.dynamic_rotate %36 by %c2_i32_8 dim 0 : vector<8x128xf32>, i32 -> vector<8x128xf32>
    %38 = arith.addf %36, %37 : vector<8x128xf32>
    %c4_i32_9 = arith.constant 4 : i32
    %39 = tpu.dynamic_rotate %38 by %c4_i32_9 dim 0 : vector<8x128xf32>, i32 -> vector<8x128xf32>
    %40 = arith.addf %38, %39 : vector<8x128xf32>
    %41 = vector.extract_strided_slice %28 {offsets = [0, 0], sizes = [2, 128], strides = [1, 1]} : vector<8x128xf32> to vector<2x128xf32>
    %42 = vector.extract_strided_slice %34 {offsets = [0, 0], sizes = [2, 128], strides = [1, 1]} : vector<8x128xf32> to vector<2x128xf32>
    %43 = math.log %42 : vector<2x128xf32>
    %44 = arith.addf %41, %43 : vector<2x128xf32>
    %45 = vector.extract_strided_slice %40 {offsets = [0, 0], sizes = [2, 128], strides = [1, 1]} : vector<8x128xf32> to vector<2x128xf32>
    %46 = arith.subf %44, %45 : vector<2x128xf32>
    %c0_10 = arith.constant 0 : index
    %c0_11 = arith.constant 0 : index
    %47 = vector.load %arg8[%c0_10, %c0_11] : memref<8x128xf32, #tpu.memory_space<vmem>>, vector<8x128xf32>
    %48 = arith.mulf %35, %24 : vector<8x128xf32>
    %49 = arith.addf %47, %48 : vector<8x128xf32>
    %c0_12 = arith.constant 0 : index
    %c0_13 = arith.constant 0 : index
    %50 = vector.load %arg8[%c0_12, %c0_13] : memref<8x128xf32, #tpu.memory_space<vmem>>, vector<8x128xf32>
    tpu.vector_store %arg8[%c0_12, %c0_13], %49 {strides = array<i32>} : memref<8x128xf32, #tpu.memory_space<vmem>>, vector<8x128xf32>,
    %c0_14 = arith.constant 0 : index
    %c0_15 = arith.constant 0 : index
    %51 = vector.load %arg9[%c0_14, %c0_15] : memref<8x128xf32, #tpu.memory_space<vmem>>, vector<8x128xf32>
    %52 = arith.addf %51, %35 : vector<8x128xf32>
    %c0_16 = arith.constant 0 : index
    %c0_17 = arith.constant 0 : index
    %53 = vector.load %arg9[%c0_16, %c0_17] : memref<8x128xf32, #tpu.memory_space<vmem>>, vector<8x128xf32>
    tpu.vector_store %arg9[%c0_16, %c0_17], %52 {strides = array<i32>} : memref<8x128xf32, #tpu.memory_space<vmem>>, vector<8x128xf32>,
    %c0_18 = arith.constant 0 : index
    %c0_19 = arith.constant 0 : index
    %54 = vector.load %arg10[%c0_18, %c0_19] : memref<8x128xf32, #tpu.memory_space<vmem>>, vector<8x128xf32>
    %55 = arith.addf %54, %24 : vector<8x128xf32>
    %c0_20 = arith.constant 0 : index
    %c0_21 = arith.constant 0 : index
    %56 = vector.load %arg10[%c0_20, %c0_21] : memref<8x128xf32, #tpu.memory_space<vmem>>, vector<8x128xf32>
    tpu.vector_store %arg10[%c0_20, %c0_21], %55 {strides = array<i32>} : memref<8x128xf32, #tpu.memory_space<vmem>>, vector<8x128xf32>,
    %c0_22 = arith.constant 0 : index
    %c0_23 = arith.constant 0 : index
    %57 = vector.load %arg11[%c0_22, %c0_23] : memref<2x128xf32, #tpu.memory_space<vmem>>, vector<2x128xf32>
    %58 = arith.addf %57, %46 : vector<2x128xf32>
    %c0_24 = arith.constant 0 : index
    %c0_25 = arith.constant 0 : index
    %59 = vector.load %arg11[%c0_24, %c0_25] : memref<2x128xf32, #tpu.memory_space<vmem>>, vector<2x128xf32>
    tpu.vector_store %arg11[%c0_24, %c0_25], %58 {strides = array<i32>} : memref<2x128xf32, #tpu.memory_space<vmem>>, vector<2x128xf32>,
    %c0_i32_26 = arith.constant 0 : i32
    %60 = arith.cmpi eq, %arg1, %c0_i32_26 : i32
    %61 = arith.extui %60 : i1 to i32
    %c0_i32_27 = arith.constant 0 : i32
    %62 = arith.cmpi ne, %61, %c0_i32_27 : i32
    scf.if %62 {
      %c0_28 = arith.constant 0 : index
      %c0_29 = arith.constant 0 : index
      %63 = vector.load %arg8[%c0_28, %c0_29] : memref<8x128xf32, #tpu.memory_space<vmem>>, vector<8x128xf32>
      %cst_30 = arith.constant dense<0.000000e+00> : vector<8xf32>
      %64 = vector.multi_reduction <add>, %63, %cst_30 [1] : vector<8x128xf32> to vector<8xf32>
      %65 = vector.shape_cast %64 : vector<8xf32> to vector<8x1xf32>
      %66 = vector.shape_cast %65 : vector<8x1xf32> to vector<1x8x1xf32>
      %c0_31 = arith.constant 0 : index
      %c0_32 = arith.constant 0 : index
      %c0_33 = arith.constant 0 : index
      %67 = vector.load %arg5[%c0_31, %c0_32, %c0_33] : memref<1x8x1xf32, #tpu.memory_space<vmem>>, vector<1x8x1xf32>
      tpu.vector_store %arg5[%c0_31, %c0_32, %c0_33], %66 {strides = array<i32>} : memref<1x8x1xf32, #tpu.memory_space<vmem>>, vector<1x8x1xf32>,
      %c0_34 = arith.constant 0 : index
      %c0_35 = arith.constant 0 : index
      %68 = vector.load %arg9[%c0_34, %c0_35] : memref<8x128xf32, #tpu.memory_space<vmem>>, vector<8x128xf32>
      %cst_36 = arith.constant dense<0.000000e+00> : vector<8xf32>
      %69 = vector.multi_reduction <add>, %68, %cst_36 [1] : vector<8x128xf32> to vector<8xf32>
      %70 = vector.shape_cast %69 : vector<8xf32> to vector<8x1xf32>
      %71 = vector.shape_cast %70 : vector<8x1xf32> to vector<1x8x1xf32>
      %c0_37 = arith.constant 0 : index
      %c0_38 = arith.constant 0 : index
      %c0_39 = arith.constant 0 : index
      %72 = vector.load %arg6[%c0_37, %c0_38, %c0_39] : memref<1x8x1xf32, #tpu.memory_space<vmem>>, vector<1x8x1xf32>
      tpu.vector_store %arg6[%c0_37, %c0_38, %c0_39], %71 {strides = array<i32>} : memref<1x8x1xf32, #tpu.memory_space<vmem>>, vector<1x8x1xf32>,
      %c0_40 = arith.constant 0 : index
      %c0_41 = arith.constant 0 : index
      %73 = vector.load %arg10[%c0_40, %c0_41] : memref<8x128xf32, #tpu.memory_space<vmem>>, vector<8x128xf32>
      %cst_42 = arith.constant dense<0.000000e+00> : vector<8xf32>
      %74 = vector.multi_reduction <add>, %73, %cst_42 [1] : vector<8x128xf32> to vector<8xf32>
      %75 = vector.shape_cast %74 : vector<8xf32> to vector<8x1xf32>
      %76 = vector.shape_cast %75 : vector<8x1xf32> to vector<1x8x1xf32>
      %c0_43 = arith.constant 0 : index
      %c0_44 = arith.constant 0 : index
      %c0_45 = arith.constant 0 : index
      %77 = vector.load %arg7[%c0_43, %c0_44, %c0_45] : memref<1x8x1xf32, #tpu.memory_space<vmem>>, vector<1x8x1xf32>
      tpu.vector_store %arg7[%c0_43, %c0_44, %c0_45], %76 {strides = array<i32>} : memref<1x8x1xf32, #tpu.memory_space<vmem>>, vector<1x8x1xf32>,
      %c0_46 = arith.constant 0 : index
      %c0_47 = arith.constant 0 : index
      %78 = vector.load %arg11[%c0_46, %c0_47] : memref<2x128xf32, #tpu.memory_space<vmem>>, vector<2x128xf32>
      %79 = vector.shape_cast %78 : vector<2x128xf32> to vector<1x2x128xf32>
      %cst_48 = arith.constant dense<0.000000e+00> : vector<1xf32>
      %80 = vector.multi_reduction <add>, %79, %cst_48 [1, 2] : vector<1x2x128xf32> to vector<1xf32>
      %81 = vector.shape_cast %80 : vector<1xf32> to vector<1x1x1xf32>
      %82 = vector.extract %81[0, 0, 0] : f32 from vector<1x1x1xf32>
      %83 = vector.broadcast %82 : f32 to vector<1x1x1xf32>
      %c0_49 = arith.constant 0 : index
      %c0_50 = arith.constant 0 : index
      %c0_51 = arith.constant 0 : index
      %84 = vector.load %arg4[%c0_49, %c0_50, %c0_51] : memref<1x1x1xf32, #tpu.memory_space<vmem>>, vector<1x1x1xf32>
      tpu.vector_store %arg4[%c0_49, %c0_50, %c0_51], %83 {strides = array<i32>} : memref<1x1x1xf32, #tpu.memory_space<vmem>>, vector<1x1x1xf32>,
    } else {
    }
    return
  }
  func.func @transform_0(%arg0: i32, %arg1: i32) -> (i32, i32, i32) {
    %c0_i32 = arith.constant 0 : i32
    %c0_i32_0 = arith.constant 0 : i32
    return %arg0, %c0_i32, %arg1 : i32, i32, i32
  }
  func.func @transform_1(%arg0: i32, %arg1: i32) -> (i32, i32, i32) {
    %c0_i32 = arith.constant 0 : i32
    %c0_i32_0 = arith.constant 0 : i32
    return %arg0, %c0_i32, %arg1 : i32, i32, i32
  }
  func.func @transform_2(%arg0: i32, %arg1: i32) -> (i32, i32, i32) {
    %c0_i32 = arith.constant 0 : i32
    %c0_i32_0 = arith.constant 0 : i32
    %c0_i32_1 = arith.constant 0 : i32
    return %arg0, %c0_i32, %c0_i32_0 : i32, i32, i32
  }
  func.func @transform_3(%arg0: i32, %arg1: i32) -> (i32, i32, i32) {
    %c0_i32 = arith.constant 0 : i32
    %c0_i32_0 = arith.constant 0 : i32
    %c0_i32_1 = arith.constant 0 : i32
    return %arg0, %c0_i32, %c0_i32_0 : i32, i32, i32
  }
  func.func @transform_4(%arg0: i32, %arg1: i32) -> (i32, i32, i32) {
    %c0_i32 = arith.constant 0 : i32
    %c0_i32_0 = arith.constant 0 : i32
    %c0_i32_1 = arith.constant 0 : i32
    return %arg0, %c0_i32, %c0_i32_0 : i32, i32, i32
  }
  func.func @transform_5(%arg0: i32, %arg1: i32) -> (i32, i32, i32) {
    %c0_i32 = arith.constant 0 : i32
    %c0_i32_0 = arith.constant 0 : i32
    %c0_i32_1 = arith.constant 0 : i32
    return %arg0, %c0_i32, %c0_i32_0 : i32, i32, i32
  }
}

</mosaic_0001>

<llo_original>
// kernel: a_call__.1
$region0: #{a_call__.1}
  #allocation0 [shape = 'u32[]', space=smem, size = 0x4, offset = 0x4, fixed_abs, tag = 'smem constant byte address 0x4 - core index']
  #allocation1 [shape = 'u32[144,128]{1,0:T(1,128)}', space=vmem, size = 0x12000, scoped, tag = 'internal scratch']
  #allocation2 [shape = 'f32[8,128]{1,0:T(8,128)}', space=vmem, size = 0x1000, scoped, tag = 'scratch operand']
  #allocation3 [shape = 'f32[8,128]{1,0:T(8,128)}', space=vmem, size = 0x1000, scoped, tag = 'scratch operand']
  #allocation4 [shape = 'f32[8,128]{1,0:T(8,128)}', space=vmem, size = 0x1000, scoped, tag = 'scratch operand']
  #allocation5 [shape = 'f32[2,128]{1,0:T(2,128)}', space=vmem, size = 0x400, scoped, tag = 'scratch operand']
  %s0 = inlined_call_operand.vmem [shape: f32[2,8,128], index: 0, kind: input, shape index: {}]
  %s1 = inlined_call_operand.vmem [shape: s32[2,2,128], index: 1, kind: input, shape index: {}]
  %s2 = inlined_call_operand.vmem [shape: f32[2,1,1], index: 2, kind: output, shape index: {0}]
  %s3 = inlined_call_operand.vmem [shape: f32[2,8,1], index: 3, kind: output, shape index: {1}]
  %s4 = inlined_call_operand.vmem [shape: f32[2,8,1], index: 4, kind: output, shape index: {2}]
  %s5 = inlined_call_operand.vmem [shape: f32[2,8,1], index: 5, kind: output, shape index: {3}]
  %6 = xla_tuple %s2, %s3, %s4, %s5
  %s7 = sld [smem:[#allocation0]]
  $region73: #{a_call__.1} parent=0
    _
  %s9 = ssub.s32 1, %s7
  %s10 = scalar_select 0, %s9, %s7
  loop: start=0, step=1, limit=4
  $region2: #{a_call__.1} parent=0 // loop_pre_header
    _
  $region3: #{a_call__.1} parent=0 // loop_header
    %s12 = sphi 0, %s16
    %p13 = scmp.ge.s32.totalorder %s12, 4
    %s19 = sphi 0, %s31
    %s20 = sphi 0, %s27
    %s21 = sphi 0, %s19
    %s22 = sphi 0, %s20
    %s23 = sphi 0, %s21
    %s24 = sphi 0, %s22
    %s36 = sphi 0, %s38
    %s39 = sphi 0, %s36
    %s40 = sphi 0, %s39
    %s56 = sphi 0, %s40
    %s64 = sphi 0, %s66
    %s67 = sphi 0, %s64
    %s68 = sphi 0, %s67
    %s84 = sphi 0, %s68
    %s90 = sphi 0, %s92
    %s93 = sphi 0, %s90
    %s94 = sphi 0, %s93
    %s110 = sphi 0, %s94
    %s116 = sphi 0, %s118
    %s119 = sphi 0, %s116
    %s120 = sphi 0, %s119
    %s136 = sphi 0, %s120
    %s142 = sphi 0, %s144
    %s145 = sphi 0, %s142
    %s146 = sphi 0, %s145
    %s162 = sphi 0, %s146
    %s168 = sphi 0, %s170
    %s171 = sphi 0, %s168
    %s172 = sphi 0, %s171
    %s188 = sphi 0, %s172
  $region4: #{a_call__.1} parent=0 // loop_header_branch
    %15 = sbr.rel (%p13) target = $region8
  $region5: #{a_call__.1} parent=0 // loop_body
    %s17 = ssub.s32 %s12, 1
    %s18 = ssub.s32 %s12, 2
    %s25 = sadd.s32 1, %s20
    %p26 = scmp.ge.s32.totalorder %s25, 1
    %s27 = scalar_select %p26, 0, %s25
    %s28 = sadd.s32 1, %s19
    %s29 = scalar_select %p26, %s28, %s19
    %p30 = scmp.ge.s32.totalorder %s29, 2
    %s31 = scalar_select %p30, 0, %s29
    %s32 = ssub.s32 %s19, %s31
    %s33 = ssub.s32 %s20, %s27
    %s34 = sor.u32 %s32, %s33
    %p35 = scmp.eq.s32.totalorder %s34, 0
    %s37 = sadd.s32 %s36, 1
    %s38 = scalar_select %p35, %s36, %s37
    %p41 = pneg %p35
    %p42 = scmp.eq.s32.totalorder %s12, 1
    %p43 = por %p41, %p42
    %p44 = scmp.ne.s32.totalorder %s36, %s39
    %p45 = scmp.eq.s32.totalorder %s12, 0
    %p46 = por %p44, %p45
    %p47 = scmp.ne.s32.totalorder %s36, %s39
    %p48 = scmp.eq.s32.totalorder %s17, 1
    %p49 = por %p47, %p48
    %p50 = scmp.ne.s32.totalorder %s39, %s40
    %p51 = scmp.eq.s32.totalorder %s17, 0
    %p52 = por %p50, %p51
    %p53 = scmp.ne.s32.totalorder %s39, %s40
    %p54 = scmp.eq.s32.totalorder %s18, 1
    %p55 = por %p53, %p54
    %p57 = scmp.ne.s32.totalorder %s40, %s56
    %p58 = scmp.eq.s32.totalorder %s18, 0
    %p59 = por %p57, %p58
    %s60 = ssub.s32 %s19, %s31
    %s61 = ssub.s32 %s20, %s27
    %s62 = sor.u32 %s60, %s61
    %p63 = scmp.eq.s32.totalorder %s62, 0
    %s65 = sadd.s32 %s64, 1
    %s66 = scalar_select %p63, %s64, %s65
    %p69 = pneg %p63
    %p70 = scmp.eq.s32.totalorder %s12, 1
    %p71 = por %p69, %p70
    %p72 = scmp.ne.s32.totalorder %s64, %s67
    %p73 = scmp.eq.s32.totalorder %s12, 0
    %p74 = por %p72, %p73
    %p75 = scmp.ne.s32.totalorder %s64, %s67
    %p76 = scmp.eq.s32.totalorder %s17, 1
    %p77 = por %p75, %p76
    %p78 = scmp.ne.s32.totalorder %s67, %s68
    %p79 = scmp.eq.s32.totalorder %s17, 0
    %p80 = por %p78, %p79
    %p81 = scmp.ne.s32.totalorder %s67, %s68
    %p82 = scmp.eq.s32.totalorder %s18, 1
    %p83 = por %p81, %p82
    %p85 = scmp.ne.s32.totalorder %s68, %s84
    %p86 = scmp.eq.s32.totalorder %s18, 0
    %p87 = por %p85, %p86
    %s88 = ssub.s32 %s19, %s31
    %p89 = scmp.eq.s32.totalorder %s88, 0
    %s91 = sadd.s32 %s90, 1
    %s92 = scalar_select %p89, %s90, %s91
    %p95 = pneg %p89
    %p96 = scmp.eq.s32.totalorder %s12, 1
    %p97 = por %p95, %p96
    %p98 = scmp.ne.s32.totalorder %s90, %s93
    %p99 = scmp.eq.s32.totalorder %s12, 0
    %p100 = por %p98, %p99
    %p101 = scmp.ne.s32.totalorder %s90, %s93
    %p102 = scmp.eq.s32.totalorder %s17, 1
    %p103 = por %p101, %p102
    %p104 = scmp.ne.s32.totalorder %s93, %s94
    %p105 = scmp.eq.s32.totalorder %s17, 0
    %p106 = por %p104, %p105
    %p107 = scmp.ne.s32.totalorder %s93, %s94
    %p108 = scmp.eq.s32.totalorder %s18, 1
    %p109 = por %p107, %p108
    %p111 = scmp.ne.s32.totalorder %s94, %s110
    %p112 = scmp.eq.s32.totalorder %s18, 0
    %p113 = por %p111, %p112
    %s114 = ssub.s32 %s19, %s31
    %p115 = scmp.eq.s32.totalorder %s114, 0
    %s117 = sadd.s32 %s116, 1
    %s118 = scalar_select %p115, %s116, %s117
    %p121 = pneg %p115
    %p122 = scmp.eq.s32.totalorder %s12, 1
    %p123 = por %p121, %p122
    %p124 = scmp.ne.s32.totalorder %s116, %s119
    %p125 = scmp.eq.s32.totalorder %s12, 0
    %p126 = por %p124, %p125
    %p127 = scmp.ne.s32.totalorder %s116, %s119
    %p128 = scmp.eq.s32.totalorder %s17, 1
    %p129 = por %p127, %p128
    %p130 = scmp.ne.s32.totalorder %s119, %s120
    %p131 = scmp.eq.s32.totalorder %s17, 0
    %p132 = por %p130, %p131
    %p133 = scmp.ne.s32.totalorder %s119, %s120
    %p134 = scmp.eq.s32.totalorder %s18, 1
    %p135 = por %p133, %p134
    %p137 = scmp.ne.s32.totalorder %s120, %s136
    %p138 = scmp.eq.s32.totalorder %s18, 0
    %p139 = por %p137, %p138
    %s140 = ssub.s32 %s19, %s31
    %p141 = scmp.eq.s32.totalorder %s140, 0
    %s143 = sadd.s32 %s142, 1
    %s144 = scalar_select %p141, %s142, %s143
    %p147 = pneg %p141
    %p148 = scmp.eq.s32.totalorder %s12, 1
    %p149 = por %p147, %p148
    %p150 = scmp.ne.s32.totalorder %s142, %s145
    %p151 = scmp.eq.s32.totalorder %s12, 0
    %p152 = por %p150, %p151
    %p153 = scmp.ne.s32.totalorder %s142, %s145
    %p154 = scmp.eq.s32.totalorder %s17, 1
    %p155 = por %p153, %p154
    %p156 = scmp.ne.s32.totalorder %s145, %s146
    %p157 = scmp.eq.s32.totalorder %s17, 0
    %p158 = por %p156, %p157
    %p159 = scmp.ne.s32.totalorder %s145, %s146
    %p160 = scmp.eq.s32.totalorder %s18, 1
    %p161 = por %p159, %p160
    %p163 = scmp.ne.s32.totalorder %s146, %s162
    %p164 = scmp.eq.s32.totalorder %s18, 0
    %p165 = por %p163, %p164
    %s166 = ssub.s32 %s19, %s31
    %p167 = scmp.eq.s32.totalorder %s166, 0
    %s169 = sadd.s32 %s168, 1
    %s170 = scalar_select %p167, %s168, %s169
    %p173 = pneg %p167
    %p174 = scmp.eq.s32.totalorder %s12, 1
    %p175 = por %p173, %p174
    %p176 = scmp.ne.s32.totalorder %s168, %s171
    %p177 = scmp.eq.s32.totalorder %s12, 0
    %p178 = por %p176, %p177
    %p179 = scmp.ne.s32.totalorder %s168, %s171
    %p180 = scmp.eq.s32.totalorder %s17, 1
    %p181 = por %p179, %p180
    %p182 = scmp.ne.s32.totalorder %s171, %s172
    %p183 = scmp.eq.s32.totalorder %s17, 0
    %p184 = por %p182, %p183
    %p185 = scmp.ne.s32.totalorder %s171, %s172
    %p186 = scmp.eq.s32.totalorder %s18, 1
    %p187 = por %p185, %p186
    %p189 = scmp.ne.s32.totalorder %s172, %s188
    %p190 = scmp.eq.s32.totalorder %s18, 0
    %p191 = por %p189, %p190
    %p192 = scmp.le.s32.totalorder 1, %s12
    %p193 = scmp.lt.s32.totalorder %s12, 3
    %p194 = pnand %p192, %p193
    %p195 = pneg %p194
    // Predicated region
    $region9: #{a_call__.1} parent=5 // pred_check
      _
    $region10: #{a_call__.1} parent=5 // pred_check_branch
      %197 = sbr.rel (%p194) target = $region12
    $region11: #{a_call__.1} parent=5 // pred_region
      %s198 = ssub.s32 %s12, 1
    $region12: #{a_call__.1} parent=5 // pred_fallthru
      _
    %p199 = scmp.lt.s32.totalorder %s12, 2
    // Predicated region
    $region13: #{a_call__.1} parent=5 // pred_check
      %p200 = pneg %p199
    $region14: #{a_call__.1} parent=5 // pred_check_branch
      %202 = sbr.rel (%p200) target = $region16
    $region15: #{a_call__.1} parent=5 // pred_region
      // Predicated region
      $region17: #{a_call__.1} parent=15 // pred_check
        %p203 = pneg %p46
      $region18: #{a_call__.1} parent=15 // pred_check_branch
        %205 = sbr.rel (%p203) target = $region20
      $region19: #{a_call__.1} parent=15 // pred_region
        %p206 = scmp.lt.s32.totalorder %s19, 1
        %s207 = scalar_select %p206, %s19, 1
        %p208 = scmp.lt.s32.totalorder %s20, 0
        %s209 = scalar_select %p208, %s20, 0
        %s210 = sadd.s32 %s209, %s207
        %s211 = smul.addr %s210, 8
        %s212 = scalar_lea.vmem %s0, %s211
      $region20: #{a_call__.1} parent=15 // pred_fallthru
        _
      // Predicated region
      $region21: #{a_call__.1} parent=15 // pred_check
        %p213 = pneg %p74
      $region22: #{a_call__.1} parent=15 // pred_check_branch
        %215 = sbr.rel (%p213) target = $region24
      $region23: #{a_call__.1} parent=15 // pred_region
        %p216 = scmp.lt.s32.totalorder %s19, 1
        %s217 = scalar_select %p216, %s19, 1
        %p218 = scmp.lt.s32.totalorder %s20, 0
        %s219 = scalar_select %p218, %s20, 0
        %s220 = sadd.s32 %s219, %s217
        %s221 = smul.addr %s220, 2
        %s222 = scalar_lea.vmem %s1, %s221
      $region24: #{a_call__.1} parent=15 // pred_fallthru
        _
    $region16: #{a_call__.1} parent=5 // pred_fallthru
      _
    %p223 = scmp.le.s32.totalorder 1, %s12
    %p224 = scmp.lt.s32.totalorder %s12, 3
    %p225 = pnand %p223, %p224
    %p226 = pneg %p225
    // Predicated region
    $region25: #{a_call__.1} parent=5 // pred_check
      _
    $region26: #{a_call__.1} parent=5 // pred_check_branch
      %228 = sbr.rel (%p225) target = $region28
    $region27: #{a_call__.1} parent=5 // pred_region
      %s229 = ssub.s32 %s12, 1
      %p230 = scmp.lt.s32.totalorder %s21, 1
      %s231 = scalar_select %p230, %s21, 1
      %p232 = scmp.lt.s32.totalorder %s22, 0
      %s233 = scalar_select %p232, %s22, 0
      %s234 = sadd.s32 %s233, %s231
      %s235 = smul.addr %s234, 8
      %s236 = scalar_lea.vmem %s0, %s235
      %p237 = pneg %p52
      %p238 = pneg %p49
      %p239 = scmp.lt.s32.totalorder %s21, 1
      %s240 = scalar_select %p239, %s21, 1
      %p241 = scmp.lt.s32.totalorder %s22, 0
      %s242 = scalar_select %p241, %s22, 0
      %s243 = sadd.s32 %s242, %s240
      %s244 = smul.addr %s243, 2
      %s245 = scalar_lea.vmem %s1, %s244
      %p246 = pneg %p80
      %p247 = pneg %p77
      %p248 = pneg %p106
      %p249 = pneg %p103
      %p250 = scmp.lt.s32.totalorder %s21, 1
      %s251 = scalar_select %p250, %s21, 1
      %s252 = scalar_lea.vmem %s2, %s251
      %p253 = pneg %p132
      %p254 = pneg %p129
      %p255 = scmp.lt.s32.totalorder %s21, 1
      %s256 = scalar_select %p255, %s21, 1
      %s257 = smul.addr %s256, 8
      %s258 = scalar_lea.vmem %s3, %s257
      %p259 = pneg %p158
      %p260 = pneg %p155
      %p261 = scmp.lt.s32.totalorder %s21, 1
      %s262 = scalar_select %p261, %s21, 1
      %s263 = smul.addr %s262, 8
      %s264 = scalar_lea.vmem %s4, %s263
      %p265 = pneg %p184
      %p266 = pneg %p181
      %p267 = scmp.lt.s32.totalorder %s21, 1
      %s268 = scalar_select %p267, %s21, 1
      %s269 = smul.addr %s268, 8
      %s270 = scalar_lea.vmem %s5, %s269
      %p271 = scmp.lt.s32.totalorder %s21, 1
      %s272 = scalar_select %p271, %s21, 1
      %p273 = scmp.lt.s32.totalorder %s22, 0
      %s274 = scalar_select %p273, %s22, 0
      %s275 = sadd.s32 %s274, %s272
      %s276 = smul.addr %s275, 8
      %s277 = scalar_lea.vmem %s0, %s276
      %p278 = scmp.lt.s32.totalorder %s21, 1
      %s279 = scalar_select %p278, %s21, 1
      %p280 = scmp.lt.s32.totalorder %s22, 0
      %s281 = scalar_select %p280, %s22, 0
      %s282 = sadd.s32 %s281, %s279
      %s283 = smul.addr %s282, 2
      %s284 = scalar_lea.vmem %s1, %s283
      %p285 = scmp.lt.s32.totalorder %s21, 1
      %s286 = scalar_select %p285, %s21, 1
      %s287 = scalar_lea.vmem %s2, %s286
      %p288 = scmp.lt.s32.totalorder %s21, 1
      %s289 = scalar_select %p288, %s21, 1
      %s290 = smul.addr %s289, 8
      %s291 = scalar_lea.vmem %s3, %s290
      %p292 = scmp.lt.s32.totalorder %s21, 1
      %s293 = scalar_select %p292, %s21, 1
      %s294 = smul.addr %s293, 8
      %s295 = scalar_lea.vmem %s4, %s294
      %p296 = scmp.lt.s32.totalorder %s21, 1
      %s297 = scalar_select %p296, %s21, 1
      %s298 = smul.addr %s297, 8
      %s299 = scalar_lea.vmem %s5, %s298
      %p300 = scmp.eq.s32.totalorder %s22, 0
      // Predicated region
      $region29: #{a_call__.1} parent=27 // pred_check
        %p301 = pneg %p300
      $region30: #{a_call__.1} parent=27 // pred_check_branch
        %303 = sbr.rel (%p301) target = $region32
      $region31: #{a_call__.1} parent=27 // pred_region
        %304 = vst [vmem:[#allocation2] sm:$0xff] 0.0
        %305 = vst [vmem:[#allocation3] sm:$0xff] 0.0
        %306 = vst [vmem:[#allocation4] sm:$0xff] 0.0
        %307 = vst [vmem:[#allocation5] sm:$0x3] 0.0
      $region32: #{a_call__.1} parent=27 // pred_fallthru
        _
      %v308 = vld [vmem:[%s277] sm:$0xff]
      %v309 = vld [vmem:[%s284] sm:$0x3]
      %vm310 = vcmp.eq.s32.totalorder %v309, 85
      %vm311 = vcmp.eq.s32.totalorder %v309, 170
      %vm312 = vcmp.eq.s32.totalorder %v309, 255
      %vm313 = vmor %vm310, %vm311
      %vm314 = vmor %vm313, %vm312
      %vm315 = vmxor %vm314, 1
      %v316 = vsel %vm315, 1, 0
      %v317 = vcvt.s32.f32 %v316
      %v318 = vsel %vm310, 1, 0
      %v319 = vcvt.s32.f32 %v318
      %v320 = vsel %vm311, 1, 0
      %v321 = vcvt.s32.f32 %v320
      %v322 = vsel %vm312, 1, 0
      %v323 = vcvt.s32.f32 %v322
      %v325 = vrot.slane %v319, 6
      %v328 = vrot.slane %v321, 4
      %v331 = vrot.slane %v323, 2
      %vm333 = vcmask 1041408
      %v334 = vsel %vm333, %v317, %v325
      %vm335 = vcmask 1043456
      %v336 = vsel %vm335, %v334, %v328
      %vm337 = vcmask 1045504
      %v338 = vsel %vm337, %v336, %v331
      %v339 = vrot.slane %v308, 6
      %v340 = vmax.f32 %v308, %v339
      %v341 = vrot.slane %v340, 4
      %v342 = vmax.f32 %v340, %v341
      %v343 = vsub.f32 %v308, %v342
      %v344 = vmul.f32 %v343, 1.442695
      %v345 = vpow.pop %v344
      %v346 = vrot.slane %v345, 6
      %v347 = vadd.f32 %v345, %v346
      %v348 = vrot.slane %v347, 4
      %v349 = vadd.f32 %v347, %v348
      %v350 = vrcp.pop %v349
      %v351 = vmul.f32 %v345, %v350
      %v352 = vmul.f32 %v338, %v308
      %v353 = vrot.slane %v352, 6
      %v354 = vadd.f32 %v352, %v353
      %v355 = vrot.slane %v354, 4
      %v356 = vadd.f32 %v354, %v355
      %v357 = vlog2.pop %v349
      %v358 = vmul.f32 %v357, 0.6931472
      %v359 = vadd.f32 %v342, %v358
      %v360 = vsub.f32 %v359, %v356
      %v361 = vld [vmem:[#allocation2] sm:$0xff]
      %v362 = vmul.f32 %v351, %v338
      %v363 = vadd.f32 %v361, %v362
      %364 = vst [vmem:[#allocation2] sm:$0xff] %v363
      %v365 = vld [vmem:[#allocation3] sm:$0xff]
      %v366 = vadd.f32 %v365, %v351
      %367 = vst [vmem:[#allocation3] sm:$0xff] %v366
      %v368 = vld [vmem:[#allocation4] sm:$0xff]
      %v369 = vadd.f32 %v368, %v338
      %370 = vst [vmem:[#allocation4] sm:$0xff] %v369
      %v371 = vld [vmem:[#allocation5] sm:$0x3]
      %v372 = vadd.f32 %v371, %v360
      %373 = vst [vmem:[#allocation5] sm:$0x3] %v372
      // Predicated region
      $region33: #{a_call__.1} parent=27 // pred_check
        %p374 = pneg %p300
      $region34: #{a_call__.1} parent=27 // pred_check_branch
        %376 = sbr.rel (%p374) target = $region36
      $region35: #{a_call__.1} parent=27 // pred_region
        %v377 = vld [vmem:[#allocation2] sm:$0xff]
        %378 = vadd.xlane.f32.xlu0 %v377
        %v379 = vpop.xlane.xlu0 %378
        %vm380 = vcmask 7168
        %381 = vst.msk [vmem:[%s291] sm:$0xff] %vm380, %v379
        %v382 = vld [vmem:[#allocation3] sm:$0xff]
        %383 = vadd.xlane.f32.xlu0 %v382
        %v384 = vpop.xlane.xlu0 %383
        %385 = vst.msk [vmem:[%s295] sm:$0xff] %vm380, %v384
        %v386 = vld [vmem:[#allocation4] sm:$0xff]
        %387 = vadd.xlane.f32.xlu0 %v386
        %v388 = vpop.xlane.xlu0 %387
        %389 = vst.msk [vmem:[%s299] sm:$0xff] %vm380, %v388
        %v390 = vld [vmem:[#allocation5] sm:$0x3]
        %v391 = vsel %vm333, %v390, 0.0
        %392 = vadd.xlane.f32.xlu0 %v391
        %v393 = vpop.xlane.xlu0 %392
        %v394 = vrot.slane %v393, 4
        %v395 = vadd.f32 %v393, %v394
        %v396 = vrot.slane %v395, 2
        %v397 = vadd.f32 %v395, %v396
        %v398 = vrot.slane %v397, 1
        %v399 = vadd.f32 %v397, %v398
        %s400 = vtos %v399
        %v401 = vstv %s400
        %vm402 = vcmask 0
        %403 = vst.msk [vmem:[%s287] sm:$0x1] %vm402, %v401
      $region36: #{a_call__.1} parent=27 // pred_fallthru
        _
      %p404 = scmp.lt.s32.totalorder %s21, 1
      %s405 = scalar_select %p404, %s21, 1
      %s406 = scalar_lea.vmem %s2, %s405
      %p407 = scmp.lt.s32.totalorder %s21, 1
      %s408 = scalar_select %p407, %s21, 1
      %s409 = smul.addr %s408, 8
      %s410 = scalar_lea.vmem %s3, %s409
      %p411 = scmp.lt.s32.totalorder %s21, 1
      %s412 = scalar_select %p411, %s21, 1
      %s413 = smul.addr %s412, 8
      %s414 = scalar_lea.vmem %s4, %s413
      %p415 = scmp.lt.s32.totalorder %s21, 1
      %s416 = scalar_select %p415, %s21, 1
      %s417 = smul.addr %s416, 8
      %s418 = scalar_lea.vmem %s5, %s417
      // Predicated region
      $region37: #{a_call__.1} parent=27 // pred_check
        %p419 = pneg %p103
      $region38: #{a_call__.1} parent=27 // pred_check_branch
        %421 = sbr.rel (%p419) target = $region40
      $region39: #{a_call__.1} parent=27 // pred_region
        _
      $region40: #{a_call__.1} parent=27 // pred_fallthru
        _
      // Predicated region
      $region41: #{a_call__.1} parent=27 // pred_check
        %p422 = pneg %p129
      $region42: #{a_call__.1} parent=27 // pred_check_branch
        %424 = sbr.rel (%p422) target = $region44
      $region43: #{a_call__.1} parent=27 // pred_region
        _
      $region44: #{a_call__.1} parent=27 // pred_fallthru
        _
      // Predicated region
      $region45: #{a_call__.1} parent=27 // pred_check
        %p425 = pneg %p155
      $region46: #{a_call__.1} parent=27 // pred_check_branch
        %427 = sbr.rel (%p425) target = $region48
      $region47: #{a_call__.1} parent=27 // pred_region
        _
      $region48: #{a_call__.1} parent=27 // pred_fallthru
        _
      // Predicated region
      $region49: #{a_call__.1} parent=27 // pred_check
        %p428 = pneg %p181
      $region50: #{a_call__.1} parent=27 // pred_check_branch
        %430 = sbr.rel (%p428) target = $region52
      $region51: #{a_call__.1} parent=27 // pred_region
        _
      $region52: #{a_call__.1} parent=27 // pred_fallthru
        _
    $region28: #{a_call__.1} parent=5 // pred_fallthru
      _
    %p431 = scmp.le.s32.totalorder 2, %s12
    // Predicated region
    $region53: #{a_call__.1} parent=5 // pred_check
      %p432 = pneg %p431
    $region54: #{a_call__.1} parent=5 // pred_check_branch
      %434 = sbr.rel (%p432) target = $region56
    $region55: #{a_call__.1} parent=5 // pred_region
      %s435 = ssub.s32 %s12, 2
      // Predicated region
      $region57: #{a_call__.1} parent=55 // pred_check
        %p436 = pneg %p109
      $region58: #{a_call__.1} parent=55 // pred_check_branch
        %438 = sbr.rel (%p436) target = $region60
      $region59: #{a_call__.1} parent=55 // pred_region
        %p439 = scmp.lt.s32.totalorder %s23, 1
        %s440 = scalar_select %p439, %s23, 1
        %s441 = scalar_lea.vmem %s2, %s440
      $region60: #{a_call__.1} parent=55 // pred_fallthru
        _
      // Predicated region
      $region61: #{a_call__.1} parent=55 // pred_check
        %p442 = pneg %p135
      $region62: #{a_call__.1} parent=55 // pred_check_branch
        %444 = sbr.rel (%p442) target = $region64
      $region63: #{a_call__.1} parent=55 // pred_region
        %p445 = scmp.lt.s32.totalorder %s23, 1
        %s446 = scalar_select %p445, %s23, 1
        %s447 = smul.addr %s446, 8
        %s448 = scalar_lea.vmem %s3, %s447
      $region64: #{a_call__.1} parent=55 // pred_fallthru
        _
      // Predicated region
      $region65: #{a_call__.1} parent=55 // pred_check
        %p449 = pneg %p161
      $region66: #{a_call__.1} parent=55 // pred_check_branch
        %451 = sbr.rel (%p449) target = $region68
      $region67: #{a_call__.1} parent=55 // pred_region
        %p452 = scmp.lt.s32.totalorder %s23, 1
        %s453 = scalar_select %p452, %s23, 1
        %s454 = smul.addr %s453, 8
        %s455 = scalar_lea.vmem %s4, %s454
      $region68: #{a_call__.1} parent=55 // pred_fallthru
        _
      // Predicated region
      $region69: #{a_call__.1} parent=55 // pred_check
        %p456 = pneg %p187
      $region70: #{a_call__.1} parent=55 // pred_check_branch
        %458 = sbr.rel (%p456) target = $region72
      $region71: #{a_call__.1} parent=55 // pred_region
        %p459 = scmp.lt.s32.totalorder %s23, 1
        %s460 = scalar_select %p459, %s23, 1
        %s461 = smul.addr %s460, 8
        %s462 = scalar_lea.vmem %s5, %s461
      $region72: #{a_call__.1} parent=55 // pred_fallthru
        _
    $region56: #{a_call__.1} parent=5 // pred_fallthru
      _
  $region6: #{a_call__.1} parent=0 // loop_footer
    %s16 = sadd.s32 1, %s12
  $region7: #{a_call__.1} parent=0 // loop_footer_branch
    %11 = sbr.rel target = $region3
  $region8: #{a_call__.1} parent=0 // loop_exit
    _

</llo_original>
